<compile_context>
chip_gen: v6e
topology: v6e:2x2x1
jax: 0.10.0
libtpu: 0.0.40
codegen_flags: <defaults>
</compile_context>

<pallas_src>
import functools
from typing import NamedTuple

import jax
import jax.numpy as jnp
from jax.experimental import pallas as pl
from jax.experimental.pallas import tpu as pltpu

_LANE = 128
_SUBLANE = 8


def _round_up(n, m):
    return ((n + m - 1) // m) * m


def _ceil_div(a, b):
    return -(-a // b)


def _pad2(a, rows, cols):
    r, c = a.shape
    if r == rows and c == cols:
        return a
    return jnp.pad(a, ((0, rows - r), (0, cols - c)))


def _device_vmem_and_mxu():
    """(vmem_capacity_bytes, mxu_tile_dim) with conservative fallbacks."""
    vmem = None
    try:
        vmem = int(pltpu.get_tpu_info().vmem_capacity_bytes)
    except Exception:
        vmem = None
    kind = ""
    try:
        kind = jax.devices()[0].device_kind.lower()
    except Exception:
        pass
    is_v5e = ("v5" in kind) and (("lite" in kind) or ("v5e" in kind))
    if vmem is None:
        # v5e/v6e: 128 MiB; v7x: 64 MiB/TC -> conservative default 64 MiB.
        vmem = (128 << 20) if is_v5e else (64 << 20)
    mxu = 128 if is_v5e else 256  # v5e: 4x128x128 MXU; v6e/v7x: 2x256x256.
    return vmem, mxu


def _pad_dim(d, mxu_align):
    # Lane-dense minimum is 128; use 256 alignment on v6e/v7x when the dim is big
    # enough that it matters (half-filled 256x256 passes otherwise).
    if d >= _LANE and mxu_align > _LANE:
        return _round_up(d, mxu_align)
    return _round_up(d, _LANE)


class FFNParams(NamedTuple):
    w1: jax.Array
    b1: jax.Array
    w2: jax.Array
    b2: jax.Array
    w3: jax.Array
    b3: jax.Array


def prepare_ffn_params(w1, b1, w2, b2, w3, b3, *, compute_dtype=jnp.bfloat16):
    """Pad + cast the parameters ONCE (call at init time, reuse every forward).

    Weights are [in, out] (transposed vs. PyTorch). Zero-padding is exact:
    padded x columns hit padded W rows (contribute 0) and padded biases are 0,
    so tanh(0)=0 propagates zeros through padded channels. Biases stay f32
    (bias-add + tanh run in f32 on the VPU/EUP).
    """
    _, mxu = _device_vmem_and_mxu()
    d_in, h1 = w1.shape
    h2 = w2.shape[1]
    d_out = w3.shape[1]
    d_in_p = _pad_dim(d_in, mxu)
    h1_p = _pad_dim(h1, mxu)
    h2_p = _pad_dim(h2, mxu)
    d_out_p = _pad_dim(d_out, mxu)
    return FFNParams(
        w1=_pad2(jnp.asarray(w1), d_in_p, h1_p).astype(compute_dtype),
        b1=_pad2(jnp.asarray(b1).reshape(1, -1), 1, h1_p).astype(jnp.float32),
        w2=_pad2(jnp.asarray(w2), h1_p, h2_p).astype(compute_dtype),
        b2=_pad2(jnp.asarray(b2).reshape(1, -1), 1, h2_p).astype(jnp.float32),
        w3=_pad2(jnp.asarray(w3), h2_p, d_out_p).astype(compute_dtype),
        b3=_pad2(jnp.asarray(b3).reshape(1, -1), 1, d_out_p).astype(jnp.float32),
    )


def _ffn_kernel(x_ref, w1_ref, b1_ref, w2_ref, b2_ref, w3_ref, b3_ref, o_ref):
    # Layer 1: Linear + Tanh (MXU matmul, f32 accumulate; f32 bias-add + tanh).
    h1 = jnp.tanh(
        jnp.dot(x_ref[...], w1_ref[...], preferred_element_type=jnp.float32)
        + b1_ref[...]
    )
    # Layer 2: Linear + Tanh.
    h2 = jnp.tanh(
        jnp.dot(h1.astype(w2_ref.dtype), w2_ref[...],
                preferred_element_type=jnp.float32)
        + b2_ref[...]
    )
    # Layer 3: Linear (no activation).
    out = (
        jnp.dot(h2.astype(w3_ref.dtype), w3_ref[...],
                preferred_element_type=jnp.float32)
        + b3_ref[...]
    )
    o_ref[...] = out.astype(o_ref.dtype)


def _vmem_bytes_estimate(block_batch, d_in_p, h1_p, h2_p, d_out_p,
                         in_bytes, out_bytes):
    # Default pipelining double-buffers every input/output block.
    weights = 2 * (d_in_p * h1_p + h1_p * h2_p + h2_p * d_out_p) * in_bytes
    biases = 2 * (h1_p + h2_p + d_out_p) * 4
    x_tiles = 2 * block_batch * d_in_p * in_bytes
    out_tiles = 2 * block_batch * d_out_p * out_bytes
    # f32 tanh results + narrow-dtype copies for the next matmul.
    inter = block_batch * (h1_p + h2_p) * (4 + in_bytes)
    return weights + biases + x_tiles + out_tiles + inter


@functools.partial(jax.jit, static_argnames=("d_out", "block_batch", "out_dtype"))
def ffn_forward(x, params: FFNParams, *, d_out, block_batch=None,
                out_dtype=jnp.float32):
    *lead, d_in = x.shape
    d_in_p, h1_p = params.w1.shape
    h2_p = params.w2.shape[1]
    d_out_p = params.w3.shape[1]
    compute_dtype = params.w1.dtype

    x2 = x.reshape(-1, d_in)
    B = x2.shape[0]

    vmem_cap, _ = _device_vmem_and_mxu()
    in_bytes = jnp.dtype(compute_dtype).itemsize
    out_bytes = jnp.dtype(out_dtype).itemsize

    if block_batch is None:
        if B <= _SUBLANE:
            block_batch = _SUBLANE
        else:
            # >=2 grid steps so a 2-TC chip (v7x) shards the batch; larger tiles on
            # 128-MiB-VMEM chips to amortize the ~0.35us/step pipeline overhead.
            max_tile = 1024 if vmem_cap >= (96 << 20) else 512
            n_steps = max(2, _ceil_div(B, max_tile))
            block_batch = _round_up(_ceil_div(B, n_steps), _SUBLANE)
    block_batch = max(_SUBLANE, _round_up(block_batch, _SUBLANE))

    # Shrink the batch tile until the working set fits a conservative VMEM budget.
    budget = int(0.6 * vmem_cap)
    while block_batch > _SUBLANE and _vmem_bytes_estimate(
            block_batch, d_in_p, h1_p, h2_p, d_out_p, in_bytes, out_bytes) > budget:
        block_batch = max(_SUBLANE, _round_up(block_batch // 2, _SUBLANE))

    b_p = _round_up(B, block_batch)  # pad is < one tile (tile ~= cdiv(B, n_steps))
    grid = (b_p // block_batch,)

    xp = _pad2(x2, b_p, d_in_p).astype(compute_dtype)

    est = _vmem_bytes_estimate(block_batch, d_in_p, h1_p, h2_p, d_out_p,
                               in_bytes, out_bytes)
    vmem_limit = int(min(int(0.85 * vmem_cap), max(32 << 20, 2 * est)))

    out = pl.pallas_call(
        _ffn_kernel,
        out_shape=jax.ShapeDtypeStruct((b_p, d_out_p), out_dtype),
        grid_spec=pl.GridSpec(
            grid=grid,
            in_specs=[
                # x: streamed along the batch, lane-dense feature dim.
                pl.BlockSpec((block_batch, d_in_p), lambda i: (i, 0)),
                # Weights/biases: constant block index across the grid -> stay
                # VMEM-resident, no re-DMA per step.
                # TODO(synk): pipeline_mode=pl.Buffered(1) here would halve the
                # resident weight VMEM (v7x benefit); kept default-buffered to keep
                # the compile verified-clean on all generations.
                pl.BlockSpec((d_in_p, h1_p), lambda i: (0, 0)),
                pl.BlockSpec((1, h1_p), lambda i: (0, 0)),
                pl.BlockSpec((h1_p, h2_p), lambda i: (0, 0)),
                pl.BlockSpec((1, h2_p), lambda i: (0, 0)),
                pl.BlockSpec((h2_p, d_out_p), lambda i: (0, 0)),
                pl.BlockSpec((1, d_out_p), lambda i: (0, 0)),
            ],
            # Lane-dense (>=128-wide, padded) output block -> unmasked stores.
            out_specs=pl.BlockSpec((block_batch, d_out_p), lambda i: (i, 0)),
        ),
        compiler_params=pltpu.CompilerParams(
            dimension_semantics=("parallel",),
            vmem_limit_bytes=vmem_limit,
        ),
    )(xp, params.w1, params.b1, params.w2, params.b2, params.w3, params.b3)

    out = out[:B, :d_out]
    return out.reshape(*lead, d_out)


def init_linear_params(key, in_features, out_features):
    # PyTorch nn.Linear default init: U(-1/sqrt(in), 1/sqrt(in)) for weight and bias.
    kw, kb = jax.random.split(key)
    bound = 1.0 / (in_features ** 0.5)
    # Stored as [in, out] (transposed vs. PyTorch [out, in]) so the kernel does x @ W.
    w = jax.random.uniform(
        kw, (in_features, out_features), jnp.float32, minval=-bound, maxval=bound
    )
    b = jax.random.uniform(
        kb, (1, out_features), jnp.float32, minval=-bound, maxval=bound
    )
    return w, b


def ffn_reference(x, w1, b1, w2, b2, w3, b3):
    h = jnp.tanh(x @ w1 + b1)
    h = jnp.tanh(h @ w2 + b2)
    return h @ w3 + b3


if __name__ == "__main__":
    # FFNModel(input_dim=16, hidden_dim_1=32, hidden_dim_2=32, output_dim=8)
    batch = 8
    input_dim, hidden_dim_1, hidden_dim_2, output_dim = 16, 32, 32, 8

    key = jax.random.PRNGKey(0)
    kx, k1, k2, k3 = jax.random.split(key, 4)

    x = jax.random.normal(kx, (batch, input_dim), jnp.float32)
    w1, b1 = init_linear_params(k1, input_dim, hidden_dim_1)
    w2, b2 = init_linear_params(k2, hidden_dim_1, hidden_dim_2)
    w3, b3 = init_linear_params(k3, hidden_dim_2, output_dim)

    ref = ffn_reference(x, w1, b1, w2, b2, w3, b3)

    # Exact check with f32 compute.
    params_f32 = prepare_ffn_params(w1, b1, w2, b2, w3, b3,
                                    compute_dtype=jnp.float32)
    out = jax.block_until_ready(ffn_forward(x, params_f32, d_out=output_dim))
    assert out.shape == (batch, output_dim)
    assert jnp.allclose(out, ref, atol=1e-5, rtol=1e-5), "f32 mismatch vs reference"

    # Default (bf16 inputs, f32 accumulate) fast path; looser tolerance.
    params = prepare_ffn_params(w1, b1, w2, b2, w3, b3)  # bf16 by default
    out_bf16 = jax.block_until_ready(ffn_forward(x, params, d_out=output_dim))
    assert out_bf16.shape == (batch, output_dim)
    assert jnp.allclose(out_bf16, ref, atol=5e-2, rtol=5e-2), "bf16 mismatch"

    print("KERNEL_OK")
</pallas_src>

<mosaic_0001>
module attributes {stable_mosaic.version = 11 : i64} {
  func.func @_ffn_kernel(%arg0: i32, %arg1: memref<8x128xf32, #tpu.memory_space<vmem>>, %arg2: memref<128x128xf32, #tpu.memory_space<vmem>>, %arg3: memref<1x128xf32, #tpu.memory_space<vmem>>, %arg4: memref<128x128xf32, #tpu.memory_space<vmem>>, %arg5: memref<1x128xf32, #tpu.memory_space<vmem>>, %arg6: memref<128x128xf32, #tpu.memory_space<vmem>>, %arg7: memref<1x128xf32, #tpu.memory_space<vmem>>, %arg8: memref<8x128xf32, #tpu.memory_space<vmem>>) attributes {dimension_semantics = [#tpu.dimension_semantics<parallel>], iteration_bounds = array<i64: 1>, scalar_prefetch = 0 : i64, scratch_operands = 0 : i64, tpu.core_type = #tpu.core_type<tc>, window_params = [{transform_indices = @transform_0, window_bounds = array<i64: 8, 128>}, {pipeline_mode = #tpu.pipeline_mode<synchronous>, transform_indices = @transform_1, window_bounds = array<i64: 128, 128>}, {pipeline_mode = #tpu.pipeline_mode<synchronous>, transform_indices = @transform_2, window_bounds = array<i64: 1, 128>}, {pipeline_mode = #tpu.pipeline_mode<synchronous>, transform_indices = @transform_3, window_bounds = array<i64: 128, 128>}, {pipeline_mode = #tpu.pipeline_mode<synchronous>, transform_indices = @transform_4, window_bounds = array<i64: 1, 128>}, {pipeline_mode = #tpu.pipeline_mode<synchronous>, transform_indices = @transform_5, window_bounds = array<i64: 128, 128>}, {pipeline_mode = #tpu.pipeline_mode<synchronous>, transform_indices = @transform_6, window_bounds = array<i64: 1, 128>}, {transform_indices = @transform_7, window_bounds = array<i64: 8, 128>}]} {
    %c0 = arith.constant 0 : index
    %c0_0 = arith.constant 0 : index
    %0 = vector.load %arg1[%c0, %c0_0] : memref<8x128xf32, #tpu.memory_space<vmem>>, vector<8x128xf32>
    %c0_1 = arith.constant 0 : index
    %c0_2 = arith.constant 0 : index
    %1 = vector.load %arg2[%c0_1, %c0_2] : memref<128x128xf32, #tpu.memory_space<vmem>>, vector<128x128xf32>
    %cst = arith.constant dense<0.000000e+00> : vector<8x128xf32>
    %2 = tpu.matmul %0, %1, %cst {dimension_numbers = #tpu.dot_dimension_numbers<[1], [0], [0], [1], [0, 0, 1, 1], [], []>} : vector<8x128xf32>, vector<128x128xf32>, vector<8x128xf32> -> vector<8x128xf32>
    %c0_3 = arith.constant 0 : index
    %c0_4 = arith.constant 0 : index
    %3 = vector.load %arg3[%c0_3, %c0_4] : memref<1x128xf32, #tpu.memory_space<vmem>>, vector<1x128xf32>
    %4 = vector.broadcast %3 : vector<1x128xf32> to vector<8x128xf32>
    %5 = arith.addf %2, %4 : vector<8x128xf32>
    %6 = math.tanh %5 : vector<8x128xf32>
    %c0_5 = arith.constant 0 : index
    %c0_6 = arith.constant 0 : index
    %7 = vector.load %arg4[%c0_5, %c0_6] : memref<128x128xf32, #tpu.memory_space<vmem>>, vector<128x128xf32>
    %cst_7 = arith.constant dense<0.000000e+00> : vector<8x128xf32>
    %8 = tpu.matmul %6, %7, %cst_7 {dimension_numbers = #tpu.dot_dimension_numbers<[1], [0], [0], [1], [0, 0, 1, 1], [], []>} : vector<8x128xf32>, vector<128x128xf32>, vector<8x128xf32> -> vector<8x128xf32>
    %c0_8 = arith.constant 0 : index
    %c0_9 = arith.constant 0 : index
    %9 = vector.load %arg5[%c0_8, %c0_9] : memref<1x128xf32, #tpu.memory_space<vmem>>, vector<1x128xf32>
    %10 = vector.broadcast %9 : vector<1x128xf32> to vector<8x128xf32>
    %11 = arith.addf %8, %10 : vector<8x128xf32>
    %12 = math.tanh %11 : vector<8x128xf32>
    %c0_10 = arith.constant 0 : index
    %c0_11 = arith.constant 0 : index
    %13 = vector.load %arg6[%c0_10, %c0_11] : memref<128x128xf32, #tpu.memory_space<vmem>>, vector<128x128xf32>
    %cst_12 = arith.constant dense<0.000000e+00> : vector<8x128xf32>
    %14 = tpu.matmul %12, %13, %cst_12 {dimension_numbers = #tpu.dot_dimension_numbers<[1], [0], [0], [1], [0, 0, 1, 1], [], []>} : vector<8x128xf32>, vector<128x128xf32>, vector<8x128xf32> -> vector<8x128xf32>
    %c0_13 = arith.constant 0 : index
    %c0_14 = arith.constant 0 : index
    %15 = vector.load %arg7[%c0_13, %c0_14] : memref<1x128xf32, #tpu.memory_space<vmem>>, vector<1x128xf32>
    %16 = vector.broadcast %15 : vector<1x128xf32> to vector<8x128xf32>
    %17 = arith.addf %14, %16 : vector<8x128xf32>
    %c0_15 = arith.constant 0 : index
    %c0_16 = arith.constant 0 : index
    %18 = vector.load %arg8[%c0_15, %c0_16] : memref<8x128xf32, #tpu.memory_space<vmem>>, vector<8x128xf32>
    tpu.vector_store %arg8[%c0_15, %c0_16], %17 {strides = array<i32>} : memref<8x128xf32, #tpu.memory_space<vmem>>, vector<8x128xf32>,
    return
  }
  func.func @transform_0(%arg0: i32) -> (i32, i32) {
    %c0_i32 = arith.constant 0 : i32
    %c0_i32_0 = arith.constant 0 : i32
    return %arg0, %c0_i32 : i32, i32
  }
  func.func @transform_1(%arg0: i32) -> (i32, i32) {
    %c0_i32 = arith.constant 0 : i32
    %c0_i32_0 = arith.constant 0 : i32
    %c0_i32_1 = arith.constant 0 : i32
    return %c0_i32, %c0_i32_0 : i32, i32
  }
  func.func @transform_2(%arg0: i32) -> (i32, i32) {
    %c0_i32 = arith.constant 0 : i32
    %c0_i32_0 = arith.constant 0 : i32
    %c0_i32_1 = arith.constant 0 : i32
    return %c0_i32, %c0_i32_0 : i32, i32
  }
  func.func @transform_3(%arg0: i32) -> (i32, i32) {
    %c0_i32 = arith.constant 0 : i32
    %c0_i32_0 = arith.constant 0 : i32
    %c0_i32_1 = arith.constant 0 : i32
    return %c0_i32, %c0_i32_0 : i32, i32
  }
  func.func @transform_4(%arg0: i32) -> (i32, i32) {
    %c0_i32 = arith.constant 0 : i32
    %c0_i32_0 = arith.constant 0 : i32
    %c0_i32_1 = arith.constant 0 : i32
    return %c0_i32, %c0_i32_0 : i32, i32
  }
  func.func @transform_5(%arg0: i32) -> (i32, i32) {
    %c0_i32 = arith.constant 0 : i32
    %c0_i32_0 = arith.constant 0 : i32
    %c0_i32_1 = arith.constant 0 : i32
    return %c0_i32, %c0_i32_0 : i32, i32
  }
  func.func @transform_6(%arg0: i32) -> (i32, i32) {
    %c0_i32 = arith.constant 0 : i32
    %c0_i32_0 = arith.constant 0 : i32
    %c0_i32_1 = arith.constant 0 : i32
    return %c0_i32, %c0_i32_0 : i32, i32
  }
  func.func @transform_7(%arg0: i32) -> (i32, i32) {
    %c0_i32 = arith.constant 0 : i32
    %c0_i32_0 = arith.constant 0 : i32
    return %arg0, %c0_i32 : i32, i32
  }
}

</mosaic_0001>

<llo_original>
// kernel: ffn_forward.1
$region0: #{ffn_forward.1}
  #allocation0 [shape = 'u32[]', space=smem, size = 0x4, offset = 0x4, fixed_abs, tag = 'smem constant byte address 0x4 - core index']
  #allocation1 [shape = 'u32[144,128]{1,0:T(1,128)}', space=vmem, size = 0x12000, scoped, tag = 'internal scratch']
  %s0 = inlined_call_operand.vmem [shape: f32[8,128], index: 0, kind: input, shape index: {}]
  %s1 = inlined_call_operand.hbm [shape: f32[128,128], index: 1, kind: input, shape index: {}]
  %s2 = inlined_call_operand.vmem [shape: f32[1,128], index: 2, kind: input, shape index: {}]
  %s3 = inlined_call_operand.hbm [shape: f32[128,128], index: 3, kind: input, shape index: {}]
  %s4 = inlined_call_operand.vmem [shape: f32[1,128], index: 4, kind: input, shape index: {}]
  %s5 = inlined_call_operand.hbm [shape: f32[128,128], index: 5, kind: input, shape index: {}]
  %s6 = inlined_call_operand.vmem [shape: f32[1,128], index: 6, kind: input, shape index: {}]
  %s7 = inlined_call_operand.hbm [shape: f32[8,128], index: 7, kind: output, shape index: {}]
  %s8 = sld [smem:[#allocation0]]
  $region50: #{ffn_forward.1} parent=0
    _
  %s10 = ssub.s32 1, %s8
  %s11 = scalar_select 0, %s10, %s8
  $region1: #{ffn_forward.1} parent=0
    #allocation2 [shape = 'u8[65536]{0}', space=vmem, size = 0x10000, scoped, tag = 'input window, operand 1, single buffered']
    #allocation3 [shape = 's32[1]{0}', space=sflag, size = 0x4, scoped, tag = 'scoped memory for ffn_forward.1']
    #allocation4 [shape = 's32[1]{0}', space=sflag, size = 0x4, scoped, tag = 'scoped memory for ffn_forward.1']
    #allocation5 [shape = 'u8[65536]{0}', space=vmem, size = 0x10000, scoped, tag = 'input window, operand 3, single buffered']
    #allocation6 [shape = 's32[1]{0}', space=sflag, size = 0x4, scoped, tag = 'scoped memory for ffn_forward.1']
    #allocation7 [shape = 'u8[65536]{0}', space=vmem, size = 0x10000, scoped, tag = 'input window, operand 5, single buffered']
    #allocation8 [shape = 'u8[4096]{0}', space=vmem, size = 0x1000, scoped, tag = 'output window, operand 0, single buffered']
    %12 = vsyncpa [#allocation3], 0
    %13 = vsyncpa [#allocation6], 0
    %14 = vsyncpa [#allocation4], 0
    // Predicated region
    $region2: #{ffn_forward.1} parent=1 // pred_check
      _
    $region3: #{ffn_forward.1} parent=1 // pred_check_branch
      %16 = sbr.rel (0) target = $region5
    $region4: #{ffn_forward.1} parent=1 // pred_region
      _
    $region5: #{ffn_forward.1} parent=1 // pred_fallthru
      _
    // Predicated region
    $region6: #{ffn_forward.1} parent=1 // pred_check
      _
    $region7: #{ffn_forward.1} parent=1 // pred_check_branch
      %18 = sbr.rel (0) target = $region9
    $region8: #{ffn_forward.1} parent=1 // pred_region
      %s20 = ssub.s32 2048, 2048
      %21 = vsyncadd [#allocation3], %s20
      %s22 = sshll.u32 [#allocation2], 4
      %s23 = int_to_ptr.vmem [resolvable:$true] %s22
      %28 = dma.hbm_to_vmem [thread:$0]  %s1, 2048, %s23, [#allocation3], 128, 128, 8
    $region9: #{ffn_forward.1} parent=1 // pred_fallthru
      _
    // Predicated region
    $region10: #{ffn_forward.1} parent=1 // pred_check
      _
    $region11: #{ffn_forward.1} parent=1 // pred_check_branch
      %30 = sbr.rel (0) target = $region13
    $region12: #{ffn_forward.1} parent=1 // pred_region
      _
    $region13: #{ffn_forward.1} parent=1 // pred_fallthru
      _
    // Predicated region
    $region14: #{ffn_forward.1} parent=1 // pred_check
      _
    $region15: #{ffn_forward.1} parent=1 // pred_check_branch
      %32 = sbr.rel (0) target = $region17
    $region16: #{ffn_forward.1} parent=1 // pred_region
      %s34 = ssub.s32 2048, 2048
      %35 = vsyncadd [#allocation6], %s34
      %s36 = sshll.u32 [#allocation5], 4
      %s37 = int_to_ptr.vmem [resolvable:$true] %s36
      %42 = dma.hbm_to_vmem [thread:$0]  %s3, 2048, %s37, [#allocation6], 128, 128, 8
    $region17: #{ffn_forward.1} parent=1 // pred_fallthru
      _
    // Predicated region
    $region18: #{ffn_forward.1} parent=1 // pred_check
      _
    $region19: #{ffn_forward.1} parent=1 // pred_check_branch
      %44 = sbr.rel (0) target = $region21
    $region20: #{ffn_forward.1} parent=1 // pred_region
      _
    $region21: #{ffn_forward.1} parent=1 // pred_fallthru
      _
    // Predicated region
    $region22: #{ffn_forward.1} parent=1 // pred_check
      _
    $region23: #{ffn_forward.1} parent=1 // pred_check_branch
      %46 = sbr.rel (0) target = $region25
    $region24: #{ffn_forward.1} parent=1 // pred_region
      %s48 = ssub.s32 2048, 2048
      %49 = vsyncadd [#allocation6], %s48
      %s50 = sshll.u32 [#allocation7], 4
      %s51 = int_to_ptr.vmem [resolvable:$true] %s50
      %56 = dma.hbm_to_vmem [thread:$0]  %s5, 2048, %s51, [#allocation6], 128, 128, 8
    $region25: #{ffn_forward.1} parent=1 // pred_fallthru
      _
    // Predicated region
    $region26: #{ffn_forward.1} parent=1 // pred_check
      _
    $region27: #{ffn_forward.1} parent=1 // pred_check_branch
      %58 = sbr.rel (0) target = $region29
    $region28: #{ffn_forward.1} parent=1 // pred_region
      _
    $region29: #{ffn_forward.1} parent=1 // pred_fallthru
      _
    // Predicated region
    $region30: #{ffn_forward.1} parent=1 // pred_check
      _
    $region31: #{ffn_forward.1} parent=1 // pred_check_branch
      %60 = sbr.rel (0) target = $region33
    $region32: #{ffn_forward.1} parent=1 // pred_region
      %61 = dma.done [#allocation3], 2048
    $region33: #{ffn_forward.1} parent=1 // pred_fallthru
      _
    // Predicated region
    $region34: #{ffn_forward.1} parent=1 // pred_check
      _
    $region35: #{ffn_forward.1} parent=1 // pred_check_branch
      %63 = sbr.rel (0) target = $region37
    $region36: #{ffn_forward.1} parent=1 // pred_region
      %64 = dma.done [#allocation6], 2048
    $region37: #{ffn_forward.1} parent=1 // pred_fallthru
      _
    // Predicated region
    $region38: #{ffn_forward.1} parent=1 // pred_check
      _
    $region39: #{ffn_forward.1} parent=1 // pred_check_branch
      %66 = sbr.rel (0) target = $region41
    $region40: #{ffn_forward.1} parent=1 // pred_region
      %67 = dma.done [#allocation6], 2048
    $region41: #{ffn_forward.1} parent=1 // pred_fallthru
      _
    %v68 = vld [vmem:[%s0] sm:$0xff]
    %v69 = vld [vmem:[#allocation2] sm:$0xff]
    %v70 = vld [vmem:[#allocation2 + $0x8] sm:$0xff]
    %v71 = vld [vmem:[#allocation2 + $0x10] sm:$0xff]
    %v72 = vld [vmem:[#allocation2 + $0x18] sm:$0xff]
    %v73 = vld [vmem:[#allocation2 + $0x20] sm:$0xff]
    %v74 = vld [vmem:[#allocation2 + $0x28] sm:$0xff]
    %v75 = vld [vmem:[#allocation2 + $0x30] sm:$0xff]
    %v76 = vld [vmem:[#allocation2 + $0x38] sm:$0xff]
    %v77 = vld [vmem:[#allocation2 + $0x40] sm:$0xff]
    %v78 = vld [vmem:[#allocation2 + $0x48] sm:$0xff]
    %v79 = vld [vmem:[#allocation2 + $0x50] sm:$0xff]
    %v80 = vld [vmem:[#allocation2 + $0x58] sm:$0xff]
    %v81 = vld [vmem:[#allocation2 + $0x60] sm:$0xff]
    %v82 = vld [vmem:[#allocation2 + $0x68] sm:$0xff]
    %v83 = vld [vmem:[#allocation2 + $0x70] sm:$0xff]
    %v84 = vld [vmem:[#allocation2 + $0x78] sm:$0xff]
    %v85 = vld [vmem:[%s2] sm:$0x1]
    %v87 = vlaneseq
    %v88 = vshrl.u32 %v87, 7
    %v89 = vsub.s32 0, %v88
    %v90 = vrot.slane %v85, %v89
    %92 = vmatprep.subr.mxu0 0.0
    %93 = vmatpush1.msra.mxu0 %v84
    %94 = vmatprep.subr.mxu0 0.0
    %95 = vmatpush1.msra.mxu0 %v83
    %96 = vmatprep.subr.mxu0 0.0
    %97 = vmatpush1.msra.mxu0 %v82
    %98 = vmatprep.subr.mxu0 0.0
    %99 = vmatpush1.msra.mxu0 %v81
    %100 = vmatprep.subr.mxu0 0.0
    %101 = vmatpush1.msra.mxu0 %v80
    %102 = vmatprep.subr.mxu0 0.0
    %103 = vmatpush1.msra.mxu0 %v79
    %104 = vmatprep.subr.mxu0 0.0
    %105 = vmatpush1.msra.mxu0 %v78
    %106 = vmatprep.subr.mxu0 0.0
    %107 = vmatpush1.msra.mxu0 %v77
    %108 = vmatprep.subr.mxu0 0.0
    %109 = vmatpush1.msra.mxu0 %v76
    %110 = vmatprep.subr.mxu0 0.0
    %111 = vmatpush1.msra.mxu0 %v75
    %112 = vmatprep.subr.mxu0 0.0
    %113 = vmatpush1.msra.mxu0 %v74
    %114 = vmatprep.subr.mxu0 0.0
    %115 = vmatpush1.msra.mxu0 %v73
    %116 = vmatprep.subr.mxu0 0.0
    %117 = vmatpush1.msra.mxu0 %v72
    %118 = vmatprep.subr.mxu0 0.0
    %119 = vmatpush1.msra.mxu0 %v71
    %120 = vmatprep.subr.mxu0 0.0
    %121 = vmatpush1.msra.mxu0 %v70
    %122 = vmatprep.subr.mxu0 0.0
    %123 = vmatpush1.msra.mxu0 %v69
    %124 = vmatprep.subr.mxu0 0.0
    %125 = vmatpush2.msra.mxu0 0.0
    %126 = vmatprep.subr.mxu0 0.0
    %127 = vmatpush2.msra.mxu0 0.0
    %128 = vmatprep.subr.mxu0 0.0
    %129 = vmatpush2.msra.mxu0 0.0
    %130 = vmatprep.subr.mxu0 0.0
    %131 = vmatpush2.msra.mxu0 0.0
    %132 = vmatprep.subr.mxu0 0.0
    %133 = vmatpush2.msra.mxu0 0.0
    %134 = vmatprep.subr.mxu0 0.0
    %135 = vmatpush2.msra.mxu0 0.0
    %136 = vmatprep.subr.mxu0 0.0
    %137 = vmatpush2.msra.mxu0 0.0
    %138 = vmatprep.subr.mxu0 0.0
    %139 = vmatpush2.msra.mxu0 0.0
    %140 = vmatprep.subr.mxu0 0.0
    %141 = vmatpush2.msra.mxu0 0.0
    %142 = vmatprep.subr.mxu0 0.0
    %143 = vmatpush2.msra.mxu0 0.0
    %144 = vmatprep.subr.mxu0 0.0
    %145 = vmatpush2.msra.mxu0 0.0
    %146 = vmatprep.subr.mxu0 0.0
    %147 = vmatpush2.msra.mxu0 0.0
    %148 = vmatprep.subr.mxu0 0.0
    %149 = vmatpush2.msra.mxu0 0.0
    %150 = vmatprep.subr.mxu0 0.0
    %151 = vmatpush2.msra.mxu0 0.0
    %152 = vmatprep.subr.mxu0 0.0
    %153 = vmatpush2.msra.mxu0 0.0
    %154 = vmatprep.subr.mxu0 0.0
    %155 = vmatpush2.msra.mxu0 0.0
    %156 = vmatprep.mubr.f32.mxu0 0.0
    %157 = vmatmul.mubr.f32.gmra.mxu0 %v68
    %v158 = vpop.f32.mrf.mxu0
    %v159 = vadd.f32 %v90, %v158
    %v160 = vpop.f32.mrf.mxu0
    %161 = vdwg.mxu0
    %v162 = vtanh.pop %v159
    %v163 = vld [vmem:[#allocation5] sm:$0xff]
    %v164 = vld [vmem:[#allocation5 + $0x8] sm:$0xff]
    %v165 = vld [vmem:[#allocation5 + $0x10] sm:$0xff]
    %v166 = vld [vmem:[#allocation5 + $0x18] sm:$0xff]
    %v167 = vld [vmem:[#allocation5 + $0x20] sm:$0xff]
    %v168 = vld [vmem:[#allocation5 + $0x28] sm:$0xff]
    %v169 = vld [vmem:[#allocation5 + $0x30] sm:$0xff]
    %v170 = vld [vmem:[#allocation5 + $0x38] sm:$0xff]
    %v171 = vld [vmem:[#allocation5 + $0x40] sm:$0xff]
    %v172 = vld [vmem:[#allocation5 + $0x48] sm:$0xff]
    %v173 = vld [vmem:[#allocation5 + $0x50] sm:$0xff]
    %v174 = vld [vmem:[#allocation5 + $0x58] sm:$0xff]
    %v175 = vld [vmem:[#allocation5 + $0x60] sm:$0xff]
    %v176 = vld [vmem:[#allocation5 + $0x68] sm:$0xff]
    %v177 = vld [vmem:[#allocation5 + $0x70] sm:$0xff]
    %v178 = vld [vmem:[#allocation5 + $0x78] sm:$0xff]
    %v179 = vld [vmem:[%s4] sm:$0x1]
    %v181 = vlaneseq
    %v182 = vshrl.u32 %v181, 7
    %v183 = vsub.s32 0, %v182
    %v184 = vrot.slane %v179, %v183
    %186 = vmatprep.subr.mxu0 0.0
    %187 = vmatpush1.msra.mxu0 %v178
    %188 = vmatprep.subr.mxu0 0.0
    %189 = vmatpush1.msra.mxu0 %v177
    %190 = vmatprep.subr.mxu0 0.0
    %191 = vmatpush1.msra.mxu0 %v176
    %192 = vmatprep.subr.mxu0 0.0
    %193 = vmatpush1.msra.mxu0 %v175
    %194 = vmatprep.subr.mxu0 0.0
    %195 = vmatpush1.msra.mxu0 %v174
    %196 = vmatprep.subr.mxu0 0.0
    %197 = vmatpush1.msra.mxu0 %v173
    %198 = vmatprep.subr.mxu0 0.0
    %199 = vmatpush1.msra.mxu0 %v172
    %200 = vmatprep.subr.mxu0 0.0
    %201 = vmatpush1.msra.mxu0 %v171
    %202 = vmatprep.subr.mxu0 0.0
    %203 = vmatpush1.msra.mxu0 %v170
    %204 = vmatprep.subr.mxu0 0.0
    %205 = vmatpush1.msra.mxu0 %v169
    %206 = vmatprep.subr.mxu0 0.0
    %207 = vmatpush1.msra.mxu0 %v168
    %208 = vmatprep.subr.mxu0 0.0
    %209 = vmatpush1.msra.mxu0 %v167
    %210 = vmatprep.subr.mxu0 0.0
    %211 = vmatpush1.msra.mxu0 %v166
    %212 = vmatprep.subr.mxu0 0.0
    %213 = vmatpush1.msra.mxu0 %v165
    %214 = vmatprep.subr.mxu0 0.0
    %215 = vmatpush1.msra.mxu0 %v164
    %216 = vmatprep.subr.mxu0 0.0
    %217 = vmatpush1.msra.mxu0 %v163
    %218 = vmatprep.subr.mxu0 0.0
    %219 = vmatpush2.msra.mxu0 0.0
    %220 = vmatprep.subr.mxu0 0.0
    %221 = vmatpush2.msra.mxu0 0.0
    %222 = vmatprep.subr.mxu0 0.0
    %223 = vmatpush2.msra.mxu0 0.0
    %224 = vmatprep.subr.mxu0 0.0
    %225 = vmatpush2.msra.mxu0 0.0
    %226 = vmatprep.subr.mxu0 0.0
    %227 = vmatpush2.msra.mxu0 0.0
    %228 = vmatprep.subr.mxu0 0.0
    %229 = vmatpush2.msra.mxu0 0.0
    %230 = vmatprep.subr.mxu0 0.0
    %231 = vmatpush2.msra.mxu0 0.0
    %232 = vmatprep.subr.mxu0 0.0
    %233 = vmatpush2.msra.mxu0 0.0
    %234 = vmatprep.subr.mxu0 0.0
    %235 = vmatpush2.msra.mxu0 0.0
    %236 = vmatprep.subr.mxu0 0.0
    %237 = vmatpush2.msra.mxu0 0.0
    %238 = vmatprep.subr.mxu0 0.0
    %239 = vmatpush2.msra.mxu0 0.0
    %240 = vmatprep.subr.mxu0 0.0
    %241 = vmatpush2.msra.mxu0 0.0
    %242 = vmatprep.subr.mxu0 0.0
    %243 = vmatpush2.msra.mxu0 0.0
    %244 = vmatprep.subr.mxu0 0.0
    %245 = vmatpush2.msra.mxu0 0.0
    %246 = vmatprep.subr.mxu0 0.0
    %247 = vmatpush2.msra.mxu0 0.0
    %248 = vmatprep.subr.mxu0 0.0
    %249 = vmatpush2.msra.mxu0 0.0
    %250 = vmatprep.mubr.f32.mxu0 0.0
    %251 = vmatmul.mubr.f32.gmra.mxu0 %v162
    %v252 = vpop.f32.mrf.mxu0
    %v253 = vadd.f32 %v184, %v252
    %v254 = vpop.f32.mrf.mxu0
    %255 = vdwg.mxu0
    %v256 = vtanh.pop %v253
    %v257 = vld [vmem:[#allocation7] sm:$0xff]
    %v258 = vld [vmem:[#allocation7 + $0x8] sm:$0xff]
    %v259 = vld [vmem:[#allocation7 + $0x10] sm:$0xff]
    %v260 = vld [vmem:[#allocation7 + $0x18] sm:$0xff]
    %v261 = vld [vmem:[#allocation7 + $0x20] sm:$0xff]
    %v262 = vld [vmem:[#allocation7 + $0x28] sm:$0xff]
    %v263 = vld [vmem:[#allocation7 + $0x30] sm:$0xff]
    %v264 = vld [vmem:[#allocation7 + $0x38] sm:$0xff]
    %v265 = vld [vmem:[#allocation7 + $0x40] sm:$0xff]
    %v266 = vld [vmem:[#allocation7 + $0x48] sm:$0xff]
    %v267 = vld [vmem:[#allocation7 + $0x50] sm:$0xff]
    %v268 = vld [vmem:[#allocation7 + $0x58] sm:$0xff]
    %v269 = vld [vmem:[#allocation7 + $0x60] sm:$0xff]
    %v270 = vld [vmem:[#allocation7 + $0x68] sm:$0xff]
    %v271 = vld [vmem:[#allocation7 + $0x70] sm:$0xff]
    %v272 = vld [vmem:[#allocation7 + $0x78] sm:$0xff]
    %v273 = vld [vmem:[%s6] sm:$0x1]
    %v275 = vlaneseq
    %v276 = vshrl.u32 %v275, 7
    %v277 = vsub.s32 0, %v276
    %v278 = vrot.slane %v273, %v277
    %280 = vmatprep.subr.mxu0 0.0
    %281 = vmatpush1.msra.mxu0 %v272
    %282 = vmatprep.subr.mxu0 0.0
    %283 = vmatpush1.msra.mxu0 %v271
    %284 = vmatprep.subr.mxu0 0.0
    %285 = vmatpush1.msra.mxu0 %v270
    %286 = vmatprep.subr.mxu0 0.0
    %287 = vmatpush1.msra.mxu0 %v269
    %288 = vmatprep.subr.mxu0 0.0
    %289 = vmatpush1.msra.mxu0 %v268
    %290 = vmatprep.subr.mxu0 0.0
    %291 = vmatpush1.msra.mxu0 %v267
    %292 = vmatprep.subr.mxu0 0.0
    %293 = vmatpush1.msra.mxu0 %v266
    %294 = vmatprep.subr.mxu0 0.0
    %295 = vmatpush1.msra.mxu0 %v265
    %296 = vmatprep.subr.mxu0 0.0
    %297 = vmatpush1.msra.mxu0 %v264
    %298 = vmatprep.subr.mxu0 0.0
    %299 = vmatpush1.msra.mxu0 %v263
    %300 = vmatprep.subr.mxu0 0.0
    %301 = vmatpush1.msra.mxu0 %v262
    %302 = vmatprep.subr.mxu0 0.0
    %303 = vmatpush1.msra.mxu0 %v261
    %304 = vmatprep.subr.mxu0 0.0
    %305 = vmatpush1.msra.mxu0 %v260
    %306 = vmatprep.subr.mxu0 0.0
    %307 = vmatpush1.msra.mxu0 %v259
    %308 = vmatprep.subr.mxu0 0.0
    %309 = vmatpush1.msra.mxu0 %v258
    %310 = vmatprep.subr.mxu0 0.0
    %311 = vmatpush1.msra.mxu0 %v257
    %312 = vmatprep.subr.mxu0 0.0
    %313 = vmatpush2.msra.mxu0 0.0
    %314 = vmatprep.subr.mxu0 0.0
    %315 = vmatpush2.msra.mxu0 0.0
    %316 = vmatprep.subr.mxu0 0.0
    %317 = vmatpush2.msra.mxu0 0.0
    %318 = vmatprep.subr.mxu0 0.0
    %319 = vmatpush2.msra.mxu0 0.0
    %320 = vmatprep.subr.mxu0 0.0
    %321 = vmatpush2.msra.mxu0 0.0
    %322 = vmatprep.subr.mxu0 0.0
    %323 = vmatpush2.msra.mxu0 0.0
    %324 = vmatprep.subr.mxu0 0.0
    %325 = vmatpush2.msra.mxu0 0.0
    %326 = vmatprep.subr.mxu0 0.0
    %327 = vmatpush2.msra.mxu0 0.0
    %328 = vmatprep.subr.mxu0 0.0
    %329 = vmatpush2.msra.mxu0 0.0
    %330 = vmatprep.subr.mxu0 0.0
    %331 = vmatpush2.msra.mxu0 0.0
    %332 = vmatprep.subr.mxu0 0.0
    %333 = vmatpush2.msra.mxu0 0.0
    %334 = vmatprep.subr.mxu0 0.0
    %335 = vmatpush2.msra.mxu0 0.0
    %336 = vmatprep.subr.mxu0 0.0
    %337 = vmatpush2.msra.mxu0 0.0
    %338 = vmatprep.subr.mxu0 0.0
    %339 = vmatpush2.msra.mxu0 0.0
    %340 = vmatprep.subr.mxu0 0.0
    %341 = vmatpush2.msra.mxu0 0.0
    %342 = vmatprep.subr.mxu0 0.0
    %343 = vmatpush2.msra.mxu0 0.0
    %344 = vmatprep.mubr.f32.mxu0 0.0
    %345 = vmatmul.mubr.f32.gmra.mxu0 %v256
    %v346 = vpop.f32.mrf.mxu0
    %v347 = vadd.f32 %v278, %v346
    %v348 = vpop.f32.mrf.mxu0
    %349 = vdwg.mxu0
    %350 = vst [vmem:[#allocation8] sm:$0xff] %v347
    // Predicated region
    $region42: #{ffn_forward.1} parent=1 // pred_check
      _
    $region43: #{ffn_forward.1} parent=1 // pred_check_branch
      %352 = sbr.rel (0) target = $region45
    $region44: #{ffn_forward.1} parent=1 // pred_region
      %s354 = ssub.s32 128, 128
      %355 = vsyncadd [#allocation4], %s354
      %s357 = sshll.u32 [#allocation8], 4
      %s358 = int_to_ptr.vmem [resolvable:$true] %s357
      %360 = dma.vmem_to_hbm [thread:$0]  %s358, 128, %s7, [#allocation4]
    $region45: #{ffn_forward.1} parent=1 // pred_fallthru
      _
    // Predicated region
    $region46: #{ffn_forward.1} parent=1 // pred_check
      _
    $region47: #{ffn_forward.1} parent=1 // pred_check_branch
      %362 = sbr.rel (0) target = $region49
    $region48: #{ffn_forward.1} parent=1 // pred_region
      %363 = dma.done [#allocation4], 128
    $region49: #{ffn_forward.1} parent=1 // pred_fallthru
      _
    %364 = vsyncpa [#allocation3], 1
    %365 = vsyncpa [#allocation6], 1
    %366 = vsyncpa [#allocation4], 1

</llo_original>
